<compile_context>
chip_gen: v6e
topology: v6e:2x2x1
jax: 0.10.0
libtpu: 0.0.40
codegen_flags: <defaults>
</compile_context>

<pallas_src>
import functools
import math

import jax
import jax.numpy as jnp
from jax.experimental import pallas as pl
from jax.experimental.pallas import tpu as pltpu

ALPHA = (1.0, 1.0)      # alpha[0] for positives, alpha[1] for negatives
GAMMA = 2.0             # gamma == 2 -> focal weight computed as w*w (no pow)
SMOOTH = 1e-6
LANES = 128
_NEG_LOG_SMOOTH = float(-math.log(SMOOTH))          # -log(1e-6)   ~ 13.8155
_NEG_LOG_1M_SMOOTH = float(-math.log1p(-SMOOTH))    # -log(1-1e-6) ~ 1.0e-6


def _round_up(x, m):
    return (x + m - 1) // m * m


def _focal_partial_kernel(x_ref, t_ref, out_ref, *, valid_rows_last):
    """Per-block partial sums.

    out_ref (block view, shape (4, 128)) rows are lane-partials of
    [pos_loss_mag, neg_loss_mag, num_pos, num_neg]; the sign / alpha and the
    cross-lane + cross-block reduction happen in the wrapper.
    """
    x = x_ref[...].astype(jnp.float32)
    t = t_ref[...].astype(jnp.float32)

    # Numerically-stable softplus pair sharing one exp + one log (EUP):
    #   softplus(x)  = max(x, 0) + log(1 + exp(-|x|))  = -log(1 - sigmoid(x))
    #   softplus(-x) = max(-x,0) + log(1 + exp(-|x|))  = -log(sigmoid(x))
    # (finite for x = +/-inf; NaN inputs propagate like the PyTorch reference)
    nx = -x
    en = jnp.exp(jnp.minimum(x, nx))            # exp(-|x|)
    lp1 = jnp.log(1.0 + en)
    sp_pos = jnp.maximum(x, 0.0) + lp1          # -log(1 - prob)
    sp_neg = jnp.maximum(nx, 0.0) + lp1         # -log(prob)
    # torch.clamp(prob, s, 1-s) applied equivalently in the (negated) log
    # domain (log is monotonic).
    sp_pos_c = jnp.clip(sp_pos, _NEG_LOG_1M_SMOOTH, _NEG_LOG_SMOOTH)
    sp_neg_c = jnp.clip(sp_neg, _NEG_LOG_1M_SMOOTH, _NEG_LOG_SMOOTH)

    pos_sel = t == 1.0
    neg_sel = t == 0.0

    # Fused focal magnitude (alpha applied in the wrapper; gamma==2 -> square):
    #   positives: (1-p)^2 * (-log p)     = exp(-sp_pos_c)^2 * sp_neg_c
    #   negatives:  p^2    * (-log(1-p))  = exp(-sp_neg_c)^2 * sp_pos_c
    w = jnp.exp(-jnp.where(pos_sel, sp_pos_c, sp_neg_c))
    lg = jnp.where(pos_sel, sp_neg_c, sp_pos_c)
    term = (w * w) * lg

    zeros = jnp.zeros_like(term)
    ones = jnp.ones_like(term)

    def write(pmask, nmask):
        # Sublane-only reductions (keep the 128 lanes); four separate row
        # stores instead of a concatenate (no sublane relayout).
        out_ref[0:1, :] = jnp.sum(jnp.where(pmask, term, zeros),
                                  axis=0, keepdims=True)
        out_ref[1:2, :] = jnp.sum(jnp.where(nmask, term, zeros),
                                  axis=0, keepdims=True)
        out_ref[2:3, :] = jnp.sum(jnp.where(pmask, ones, zeros),
                                  axis=0, keepdims=True)
        out_ref[3:4, :] = jnp.sum(jnp.where(nmask, ones, zeros),
                                  axis=0, keepdims=True)

    if valid_rows_last is None:
        # Every grid block is full: masking compiled out entirely.
        write(pos_sel, neg_sel)
    else:
        i = pl.program_id(0)
        last = pl.num_programs(0) - 1

        @pl.when(i < last)
        def _():
            write(pos_sel, neg_sel)

        @pl.when(i == last)
        def _():
            # Only the trailing block is row-partial (lanes are always fully
            # valid: the wrapper feeds a 128-aligned prefix).  OOB rows may
            # hold garbage / NaN, so exclusion uses where-selects, never muls.
            ridx = jax.lax.broadcasted_iota(jnp.int32, term.shape, 0)
            row_ok = ridx < valid_rows_last
            write(pos_sel & row_ok, neg_sel & row_ok)


def binary_focal_loss(output, target, *, block_rows=8192):
    """Pallas implementation of BinaryFocalLoss.forward(output, target).

    output, target: same shape (e.g. NCHW), any float/int dtype (kept in
    their native dtype over HBM; cast in-kernel). Returns an f32 scalar.
    """
    assert output.shape == target.shape
    n = output.size
    assert n > 0, "empty input"

    x_flat = jnp.ravel(output)
    t_flat = jnp.ravel(target)
    m = n // LANES
    n_main = m * LANES
    rem = n - n_main

    sums = jnp.zeros((4,), jnp.float32)

    if m > 0:
        if rem:
            # Kernel runs over the 128-aligned prefix; the <128-element tail
            # is folded in below (no full-array pad/copy of the inputs).
            x2 = x_flat[:n_main].reshape(m, LANES)
            t2 = t_flat[:n_main].reshape(m, LANES)
        else:
            x2 = x_flat.reshape(m, LANES)        # free, layout-only reshape
            t2 = t_flat.reshape(m, LANES)

        # Tile sizing: respect the min sublane tile of the narrowest input
        # dtype (f32: 8, bf16: 16, int8/bool: 32) unless the block covers the
        # full row dim; keep >= 2 grid blocks for medium inputs so the
        # "parallel" grid axis can occupy both TensorCores on v7x.
        min_sub = 8
        for dt in (x2.dtype, t2.dtype):
            min_sub = max(min_sub, 32 // max(1, jnp.dtype(dt).itemsize))
        block_rows = max(min_sub, _round_up(int(block_rows), min_sub))
        if m >= 2 * min_sub:
            block_rows = min(block_rows, _round_up(-(-m // 2), min_sub))
        if block_rows > m:
            block_rows = m                        # full-dim block, tiny inputs
        num_blocks = -(-m // block_rows)

        last_rows = m - (num_blocks - 1) * block_rows
        valid_rows_last = None if last_rows == block_rows else last_rows
        kernel = functools.partial(_focal_partial_kernel,
                                   valid_rows_last=valid_rows_last)

        partials = pl.pallas_call(
            kernel,
            out_shape=jax.ShapeDtypeStruct((num_blocks, 4, LANES), jnp.float32),
            grid_spec=pltpu.PrefetchScalarGridSpec(
                num_scalar_prefetch=0,
                grid=(num_blocks,),
                in_specs=[
                    pl.BlockSpec((block_rows, LANES), lambda i: (i, 0)),
                    pl.BlockSpec((block_rows, LANES), lambda i: (i, 0)),
                ],
                # Leading dim squeezed: kernel sees a (4, 128) output block.
                out_specs=pl.BlockSpec((None, 4, LANES), lambda i: (i, 0, 0)),
            ),
            compiler_params=pltpu.CompilerParams(
                # Each grid step owns its output block -> safe to parallelize;
                # uses both TensorCores on v7x, no-op on v5e/v6e.
                dimension_semantics=("parallel",),
                # Up to 8192x128 f32 tiles -> 16 MiB of pipeline buffers;
                # exceeds v5e's 16 MiB scoped-VMEM default, so raise it (well
                # under physical VMEM on v5e/v6e/v7x).
                vmem_limit_bytes=32 * 1024 * 1024),
        )(x2, t2)

        # Tiny final reduce (num_blocks x 4 x 128 elements).
        sums = jnp.sum(partials, axis=(0, 2))     # (4,)

    if rem:
        # <128-element tail handled in plain JAX (same math as the kernel).
        xt = x_flat[n_main:].astype(jnp.float32)
        tt = t_flat[n_main:].astype(jnp.float32)
        sp_pos_c = jnp.clip(jax.nn.softplus(xt),
                            _NEG_LOG_1M_SMOOTH, _NEG_LOG_SMOOTH)
        sp_neg_c = jnp.clip(jax.nn.softplus(-xt),
                            _NEG_LOG_1M_SMOOTH, _NEG_LOG_SMOOTH)
        pos_t = tt == 1.0
        neg_t = tt == 0.0
        w = jnp.exp(-jnp.where(pos_t, sp_pos_c, sp_neg_c))
        lg = jnp.where(pos_t, sp_neg_c, sp_pos_c)
        term = (w * w) * lg
        sums = sums + jnp.stack([
            jnp.sum(jnp.where(pos_t, term, 0.0)),
            jnp.sum(jnp.where(neg_t, term, 0.0)),
            jnp.sum(pos_t.astype(jnp.float32)),
            jnp.sum(neg_t.astype(jnp.float32)),
        ])

    pos_l = ALPHA[0] * sums[0]
    neg_l = ALPHA[1] * sums[1]
    n_pos = sums[2]
    n_neg = sums[3]
    # NOTE: matches the PyTorch reference, including dividing by num_neg even
    # when num_neg == 0 (inf/nan in that corner case).
    return jnp.where(n_pos == 0.0, neg_l, pos_l / n_pos + neg_l / n_neg)


def _ref_loss(output, target):
    """Pure-JAX reference matching the PyTorch forward semantics."""
    prob = jax.nn.sigmoid(output.astype(jnp.float32))
    prob = jnp.clip(prob, SMOOTH, 1.0 - SMOOTH)
    tgt = target.astype(jnp.float32)
    pos_mask = (tgt == 1.0).astype(jnp.float32)
    neg_mask = (tgt == 0.0).astype(jnp.float32)
    pos_loss = (-ALPHA[0] * (1.0 - prob) ** 2 * jnp.log(prob) * pos_mask).sum()
    neg_loss = (-ALPHA[1] * prob ** 2 * jnp.log(1.0 - prob) * neg_mask).sum()
    num_pos = pos_mask.sum()
    num_neg = neg_mask.sum()
    return jnp.where(num_pos == 0.0, neg_loss,
                     pos_loss / num_pos + neg_loss / num_neg)


if __name__ == "__main__":
    key = jax.random.PRNGKey(0)
    k_out, k_tgt, k_out2, k_tgt2 = jax.random.split(key, 4)

    # Small NCHW shapes consistent with a segmentation logit map.
    N, C, H, W = 2, 4, 16, 16
    output = jax.random.normal(k_out, (N, C, H, W), dtype=jnp.float32)
    target = jax.random.bernoulli(k_tgt, p=0.3, shape=(N, C, H, W)).astype(
        jnp.float32)

    loss = jax.block_until_ready(binary_focal_loss(output, target))
    ref = jax.block_until_ready(_ref_loss(output, target))
    assert jnp.isfinite(loss), "kernel produced non-finite loss"
    assert jnp.allclose(loss, ref, rtol=2e-4, atol=1e-5), (loss, ref)

    # Unaligned size (numel % 128 != 0): aligned prefix in-kernel + JAX tail.
    out_u = jax.random.normal(k_out2, (3, 1, 7, 11), dtype=jnp.float32)
    tgt_u = jax.random.bernoulli(k_tgt2, p=0.3, shape=(3, 1, 7, 11)).astype(
        jnp.float32)
    loss_u = jax.block_until_ready(binary_focal_loss(out_u, tgt_u))
    ref_u = jax.block_until_ready(_ref_loss(out_u, tgt_u))
    assert jnp.isfinite(loss_u), "kernel produced non-finite loss (unaligned)"
    assert jnp.allclose(loss_u, ref_u, rtol=2e-4, atol=1e-5), (loss_u, ref_u)

    print("KERNEL_OK")
</pallas_src>

<mosaic_0001>
module attributes {stable_mosaic.version = 11 : i64} {
  func.func @_focal_partial_kernel(%arg0: i32, %arg1: memref<8x128xf32, #tpu.memory_space<vmem>>, %arg2: memref<8x128xf32, #tpu.memory_space<vmem>>, %arg3: memref<1x4x128xf32, #tpu.memory_space<vmem>>) attributes {dimension_semantics = [#tpu.dimension_semantics<parallel>], iteration_bounds = array<i64: 2>, scalar_prefetch = 0 : i64, scratch_operands = 0 : i64, tpu.core_type = #tpu.core_type<tc>, window_params = [{transform_indices = @transform_0, window_bounds = array<i64: 8, 128>}, {transform_indices = @transform_1, window_bounds = array<i64: 8, 128>}, {transform_indices = @transform_2, window_bounds = array<i64: 1, 4, 128>}]} {
    %c0 = arith.constant 0 : index
    %c0_0 = arith.constant 0 : index
    %0 = vector.load %arg1[%c0, %c0_0] : memref<8x128xf32, #tpu.memory_space<vmem>>, vector<8x128xf32>
    %c0_1 = arith.constant 0 : index
    %c0_2 = arith.constant 0 : index
    %1 = vector.load %arg2[%c0_1, %c0_2] : memref<8x128xf32, #tpu.memory_space<vmem>>, vector<8x128xf32>
    %cst = arith.constant 0.000000e+00 : f32
    %2 = vector.broadcast %cst : f32 to vector<8x128xf32>
    %3 = arith.subf %2, %0 : vector<8x128xf32>
    %4 = arith.minimumf %0, %3 : vector<8x128xf32>
    %5 = math.exp %4 : vector<8x128xf32>
    %cst_3 = arith.constant 1.000000e+00 : f32
    %6 = vector.broadcast %cst_3 : f32 to vector<8x128xf32>
    %7 = arith.addf %6, %5 : vector<8x128xf32>
    %8 = math.log %7 : vector<8x128xf32>
    %cst_4 = arith.constant 0.000000e+00 : f32
    %9 = vector.broadcast %cst_4 : f32 to vector<8x128xf32>
    %10 = arith.maximumf %0, %9 : vector<8x128xf32>
    %11 = arith.addf %10, %8 : vector<8x128xf32>
    %cst_5 = arith.constant 0.000000e+00 : f32
    %12 = vector.broadcast %cst_5 : f32 to vector<8x128xf32>
    %13 = arith.maximumf %3, %12 : vector<8x128xf32>
    %14 = arith.addf %13, %8 : vector<8x128xf32>
    %cst_6 = arith.constant 1.00000045E-6 : f32
    %cst_7 = arith.constant 13.8155107 : f32
    %15 = vector.broadcast %cst_6 : f32 to vector<8x128xf32>
    %16 = arith.maximumf %15, %11 : vector<8x128xf32>
    %17 = vector.broadcast %cst_7 : f32 to vector<8x128xf32>
    %18 = arith.minimumf %17, %16 : vector<8x128xf32>
    %cst_8 = arith.constant 1.00000045E-6 : f32
    %cst_9 = arith.constant 13.8155107 : f32
    %19 = vector.broadcast %cst_8 : f32 to vector<8x128xf32>
    %20 = arith.maximumf %19, %14 : vector<8x128xf32>
    %21 = vector.broadcast %cst_9 : f32 to vector<8x128xf32>
    %22 = arith.minimumf %21, %20 : vector<8x128xf32>
    %cst_10 = arith.constant 1.000000e+00 : f32
    %23 = vector.broadcast %cst_10 : f32 to vector<8x128xf32>
    %24 = arith.cmpf oeq, %1, %23 : vector<8x128xf32>
    %cst_11 = arith.constant 0.000000e+00 : f32
    %25 = vector.broadcast %cst_11 : f32 to vector<8x128xf32>
    %26 = arith.cmpf oeq, %1, %25 : vector<8x128xf32>
    %27 = arith.select %24, %18, %22 : vector<8x128xi1>, vector<8x128xf32>
    %cst_12 = arith.constant 0.000000e+00 : f32
    %28 = vector.broadcast %cst_12 : f32 to vector<8x128xf32>
    %29 = arith.subf %28, %27 : vector<8x128xf32>
    %30 = math.exp %29 : vector<8x128xf32>
    %31 = arith.select %24, %22, %18 : vector<8x128xi1>, vector<8x128xf32>
    %32 = arith.mulf %30, %30 : vector<8x128xf32>
    %33 = arith.mulf %32, %31 : vector<8x128xf32>
    %cst_13 = arith.constant 0.000000e+00 : f32
    %34 = vector.broadcast %cst_13 : f32 to vector<8x128xf32>
    %cst_14 = arith.constant 1.000000e+00 : f32
    %35 = vector.broadcast %cst_14 : f32 to vector<8x128xf32>
    %36 = arith.select %24, %33, %34 : vector<8x128xi1>, vector<8x128xf32>
    %cst_15 = arith.constant dense<0.000000e+00> : vector<128xf32>
    %37 = vector.multi_reduction <add>, %36, %cst_15 [0] : vector<8x128xf32> to vector<128xf32>
    %38 = vector.shape_cast %37 : vector<128xf32> to vector<1x128xf32>
    %c0_16 = arith.constant 0 : index
    %c0_17 = arith.constant 0 : index
    %c0_18 = arith.constant 0 : index
    %39 = vector.load %arg3[%c0_16, %c0_17, %c0_18] : memref<1x4x128xf32, #tpu.memory_space<vmem>>, vector<1x1x128xf32>
    %40 = vector.shape_cast %39 : vector<1x1x128xf32> to vector<1x128xf32>
    %41 = vector.shape_cast %38 : vector<1x128xf32> to vector<1x1x128xf32>
    tpu.vector_store %arg3[%c0_16, %c0_17, %c0_18], %41 {strides = array<i32>} : memref<1x4x128xf32, #tpu.memory_space<vmem>>, vector<1x1x128xf32>,
    %42 = arith.select %26, %33, %34 : vector<8x128xi1>, vector<8x128xf32>
    %cst_19 = arith.constant dense<0.000000e+00> : vector<128xf32>
    %43 = vector.multi_reduction <add>, %42, %cst_19 [0] : vector<8x128xf32> to vector<128xf32>
    %44 = vector.shape_cast %43 : vector<128xf32> to vector<1x128xf32>
    %c0_20 = arith.constant 0 : index
    %c1 = arith.constant 1 : index
    %c0_21 = arith.constant 0 : index
    %45 = vector.load %arg3[%c0_20, %c1, %c0_21] : memref<1x4x128xf32, #tpu.memory_space<vmem>>, vector<1x1x128xf32>
    %46 = vector.shape_cast %45 : vector<1x1x128xf32> to vector<1x128xf32>
    %47 = vector.shape_cast %44 : vector<1x128xf32> to vector<1x1x128xf32>
    tpu.vector_store %arg3[%c0_20, %c1, %c0_21], %47 {strides = array<i32>} : memref<1x4x128xf32, #tpu.memory_space<vmem>>, vector<1x1x128xf32>,
    %48 = arith.select %24, %35, %34 : vector<8x128xi1>, vector<8x128xf32>
    %cst_22 = arith.constant dense<0.000000e+00> : vector<128xf32>
    %49 = vector.multi_reduction <add>, %48, %cst_22 [0] : vector<8x128xf32> to vector<128xf32>
    %50 = vector.shape_cast %49 : vector<128xf32> to vector<1x128xf32>
    %c0_23 = arith.constant 0 : index
    %c2 = arith.constant 2 : index
    %c0_24 = arith.constant 0 : index
    %51 = vector.load %arg3[%c0_23, %c2, %c0_24] : memref<1x4x128xf32, #tpu.memory_space<vmem>>, vector<1x1x128xf32>
    %52 = vector.shape_cast %51 : vector<1x1x128xf32> to vector<1x128xf32>
    %53 = vector.shape_cast %50 : vector<1x128xf32> to vector<1x1x128xf32>
    tpu.vector_store %arg3[%c0_23, %c2, %c0_24], %53 {strides = array<i32>} : memref<1x4x128xf32, #tpu.memory_space<vmem>>, vector<1x1x128xf32>,
    %54 = arith.select %26, %35, %34 : vector<8x128xi1>, vector<8x128xf32>
    %cst_25 = arith.constant dense<0.000000e+00> : vector<128xf32>
    %55 = vector.multi_reduction <add>, %54, %cst_25 [0] : vector<8x128xf32> to vector<128xf32>
    %56 = vector.shape_cast %55 : vector<128xf32> to vector<1x128xf32>
    %c0_26 = arith.constant 0 : index
    %c3 = arith.constant 3 : index
    %c0_27 = arith.constant 0 : index
    %57 = vector.load %arg3[%c0_26, %c3, %c0_27] : memref<1x4x128xf32, #tpu.memory_space<vmem>>, vector<1x1x128xf32>
    %58 = vector.shape_cast %57 : vector<1x1x128xf32> to vector<1x128xf32>
    %59 = vector.shape_cast %56 : vector<1x128xf32> to vector<1x1x128xf32>
    tpu.vector_store %arg3[%c0_26, %c3, %c0_27], %59 {strides = array<i32>} : memref<1x4x128xf32, #tpu.memory_space<vmem>>, vector<1x1x128xf32>,
    return
  }
  func.func @transform_0(%arg0: i32) -> (i32, i32) {
    %c0_i32 = arith.constant 0 : i32
    %c0_i32_0 = arith.constant 0 : i32
    return %arg0, %c0_i32 : i32, i32
  }
  func.func @transform_1(%arg0: i32) -> (i32, i32) {
    %c0_i32 = arith.constant 0 : i32
    %c0_i32_0 = arith.constant 0 : i32
    return %arg0, %c0_i32 : i32, i32
  }
  func.func @transform_2(%arg0: i32) -> (i32, i32, i32) {
    %c0_i32 = arith.constant 0 : i32
    %c0_i32_0 = arith.constant 0 : i32
    %c0_i32_1 = arith.constant 0 : i32
    return %arg0, %c0_i32, %c0_i32_0 : i32, i32, i32
  }
}

</mosaic_0001>

<llo_original>
// kernel: tpu_custom_call.1
$region0: #{tpu_custom_call.1}
  #allocation0 [shape = 'u32[]', space=smem, size = 0x4, offset = 0x4, fixed_abs, tag = 'smem constant byte address 0x4 - core index']
  #allocation1 [shape = 'u32[144,128]{1,0:T(1,128)}', space=vmem, size = 0x12000, scoped, tag = 'internal scratch']
  %s0 = inlined_call_operand.hbm [shape: f32[16,128], index: 0, kind: input, shape index: {}]
  %s1 = inlined_call_operand.hbm [shape: f32[16,128], index: 1, kind: input, shape index: {}]
  %s2 = inlined_call_operand.hbm [shape: f32[2,4,128], index: 2, kind: output, shape index: {}]
  %s3 = sld [smem:[#allocation0]]
  $region49: #{tpu_custom_call.1} parent=0
    _
  %s5 = ssub.s32 1, %s3
  %s6 = scalar_select 0, %s5, %s3
  $region1: #{tpu_custom_call.1} parent=0
    #allocation2 [shape = 'u8[8192]{0}', space=vmem, size = 0x2000, scoped, tag = 'input window, operand 0']
    #allocation3 [shape = 's32[2]{0}', space=sflag, size = 0x8, scoped, tag = 'scoped memory for tpu_custom_call.1']
    #allocation4 [shape = 's32[2]{0}', space=sflag, size = 0x8, scoped, tag = 'scoped memory for tpu_custom_call.1']
    #allocation5 [shape = 'u8[8192]{0}', space=vmem, size = 0x2000, scoped, tag = 'input window, operand 1']
    #allocation6 [shape = 's32[2]{0}', space=sflag, size = 0x8, scoped, tag = 'scoped memory for tpu_custom_call.1']
    #allocation7 [shape = 'u8[4096]{0}', space=vmem, size = 0x1000, scoped, tag = 'output window, operand 0']
    %7 = vsyncpa [#allocation3], 0
    %s8 = scalar_lea.sflag [#allocation3], 1
    %9 = vsyncpa %s8, 0
    %10 = vsyncpa [#allocation6], 0
    %s11 = scalar_lea.sflag [#allocation6], 1
    %12 = vsyncpa %s11, 0
    %13 = vsyncpa [#allocation4], 0
    %s14 = scalar_lea.sflag [#allocation4], 1
    %15 = vsyncpa %s14, 0
    loop: start=0, step=1, limit=4
    $region2: #{tpu_custom_call.1} parent=1 // loop_pre_header
      _
    $region3: #{tpu_custom_call.1} parent=1 // loop_header
      %s17 = sphi 0, %s21
      %p18 = scmp.ge.s32.totalorder %s17, 4
      %s27 = sphi 0, %s29
      %s30 = sphi 0, %s27
      %s31 = sphi 0, %s30
      %s47 = sphi 0, %s31
      %s53 = sphi 0, %s55
      %s56 = sphi 0, %s53
      %s57 = sphi 0, %s56
      %s73 = sphi 0, %s57
      %s79 = sphi 0, %s81
      %s82 = sphi 0, %s79
      %s83 = sphi 0, %s82
      %s99 = sphi 0, %s83
    $region4: #{tpu_custom_call.1} parent=1 // loop_header_branch
      %20 = sbr.rel (%p18) target = $region8
    $region5: #{tpu_custom_call.1} parent=1 // loop_body
      %s22 = ssub.s32 %s17, 1
      %s23 = ssub.s32 %s17, 2
      %s24 = sadd.s32 %s17, 1
      %s25 = ssub.s32 %s17, %s24
      %p26 = scmp.eq.s32.totalorder %s25, 0
      %s28 = sadd.s32 %s27, 1
      %s29 = scalar_select %p26, %s27, %s28
      %p32 = pneg %p26
      %p33 = scmp.eq.s32.totalorder %s17, 1
      %p34 = por %p32, %p33
      %p35 = scmp.ne.s32.totalorder %s27, %s30
      %p36 = scmp.eq.s32.totalorder %s17, 0
      %p37 = por %p35, %p36
      %p38 = scmp.ne.s32.totalorder %s27, %s30
      %p39 = scmp.eq.s32.totalorder %s22, 1
      %p40 = por %p38, %p39
      %p41 = scmp.ne.s32.totalorder %s30, %s31
      %p42 = scmp.eq.s32.totalorder %s22, 0
      %p43 = por %p41, %p42
      %p44 = scmp.ne.s32.totalorder %s30, %s31
      %p45 = scmp.eq.s32.totalorder %s23, 1
      %p46 = por %p44, %p45
      %p48 = scmp.ne.s32.totalorder %s31, %s47
      %p49 = scmp.eq.s32.totalorder %s23, 0
      %p50 = por %p48, %p49
      %s51 = ssub.s32 %s17, %s24
      %p52 = scmp.eq.s32.totalorder %s51, 0
      %s54 = sadd.s32 %s53, 1
      %s55 = scalar_select %p52, %s53, %s54
      %p58 = pneg %p52
      %p59 = scmp.eq.s32.totalorder %s17, 1
      %p60 = por %p58, %p59
      %p61 = scmp.ne.s32.totalorder %s53, %s56
      %p62 = scmp.eq.s32.totalorder %s17, 0
      %p63 = por %p61, %p62
      %p64 = scmp.ne.s32.totalorder %s53, %s56
      %p65 = scmp.eq.s32.totalorder %s22, 1
      %p66 = por %p64, %p65
      %p67 = scmp.ne.s32.totalorder %s56, %s57
      %p68 = scmp.eq.s32.totalorder %s22, 0
      %p69 = por %p67, %p68
      %p70 = scmp.ne.s32.totalorder %s56, %s57
      %p71 = scmp.eq.s32.totalorder %s23, 1
      %p72 = por %p70, %p71
      %p74 = scmp.ne.s32.totalorder %s57, %s73
      %p75 = scmp.eq.s32.totalorder %s23, 0
      %p76 = por %p74, %p75
      %s77 = ssub.s32 %s17, %s24
      %p78 = scmp.eq.s32.totalorder %s77, 0
      %s80 = sadd.s32 %s79, 1
      %s81 = scalar_select %p78, %s79, %s80
      %p84 = pneg %p78
      %p85 = scmp.eq.s32.totalorder %s17, 1
      %p86 = por %p84, %p85
      %p87 = scmp.ne.s32.totalorder %s79, %s82
      %p88 = scmp.eq.s32.totalorder %s17, 0
      %p89 = por %p87, %p88
      %p90 = scmp.ne.s32.totalorder %s79, %s82
      %p91 = scmp.eq.s32.totalorder %s22, 1
      %p92 = por %p90, %p91
      %p93 = scmp.ne.s32.totalorder %s82, %s83
      %p94 = scmp.eq.s32.totalorder %s22, 0
      %p95 = por %p93, %p94
      %p96 = scmp.ne.s32.totalorder %s82, %s83
      %p97 = scmp.eq.s32.totalorder %s23, 1
      %p98 = por %p96, %p97
      %p100 = scmp.ne.s32.totalorder %s83, %s99
      %p101 = scmp.eq.s32.totalorder %s23, 0
      %p102 = por %p100, %p101
      %p103 = scmp.le.s32.totalorder 1, %s17
      %p104 = scmp.lt.s32.totalorder %s17, 3
      %p105 = pnand %p103, %p104
      %p106 = pneg %p105
      // Predicated region
      $region9: #{tpu_custom_call.1} parent=5 // pred_check
        _
      $region10: #{tpu_custom_call.1} parent=5 // pred_check_branch
        %108 = sbr.rel (%p105) target = $region12
      $region11: #{tpu_custom_call.1} parent=5 // pred_region
        %s109 = ssub.s32 %s17, 1
      $region12: #{tpu_custom_call.1} parent=5 // pred_fallthru
        _
      %p110 = scmp.lt.s32.totalorder %s17, 2
      // Predicated region
      $region13: #{tpu_custom_call.1} parent=5 // pred_check
        %p111 = pneg %p110
      $region14: #{tpu_custom_call.1} parent=5 // pred_check_branch
        %113 = sbr.rel (%p111) target = $region16
      $region15: #{tpu_custom_call.1} parent=5 // pred_region
        // Predicated region
        $region17: #{tpu_custom_call.1} parent=15 // pred_check
          %p114 = pneg %p37
        $region18: #{tpu_custom_call.1} parent=15 // pred_check_branch
          %116 = sbr.rel (%p114) target = $region20
        $region19: #{tpu_custom_call.1} parent=15 // pred_region
          %s117 = sand.u32 %s27, 1
          %s118 = scalar_lea.sflag [#allocation3], %s117
          %s119 = sand.u32 %s27, 1
          %s120 = smul.addr %s119, 8
          %s121 = scalar_lea.vmem [#allocation2], %s120
          %s123 = ssub.s32 128, 128
          %124 = vsyncadd %s118, %s123
          %s125 = smul.addr %s17, 128
          %s126 = scalar_lea.hbm %s0, %s125
          %s128 = sshll.u32 %s121, 4
          %s129 = int_to_ptr.vmem [resolvable:$true] %s128
          %131 = dma.hbm_to_vmem [thread:$0]  %s126, 128, %s129, %s118
        $region20: #{tpu_custom_call.1} parent=15 // pred_fallthru
          _
        // Predicated region
        $region21: #{tpu_custom_call.1} parent=15 // pred_check
          %p132 = pneg %p63
        $region22: #{tpu_custom_call.1} parent=15 // pred_check_branch
          %134 = sbr.rel (%p132) target = $region24
        $region23: #{tpu_custom_call.1} parent=15 // pred_region
          %s135 = sand.u32 %s53, 1
          %s136 = scalar_lea.sflag [#allocation6], %s135
          %s137 = sand.u32 %s53, 1
          %s138 = smul.addr %s137, 8
          %s139 = scalar_lea.vmem [#allocation5], %s138
          %s141 = ssub.s32 128, 128
          %142 = vsyncadd %s136, %s141
          %s143 = smul.addr %s17, 128
          %s144 = scalar_lea.hbm %s1, %s143
          %s146 = sshll.u32 %s139, 4
          %s147 = int_to_ptr.vmem [resolvable:$true] %s146
          %149 = dma.hbm_to_vmem [thread:$0]  %s144, 128, %s147, %s136
        $region24: #{tpu_custom_call.1} parent=15 // pred_fallthru
          _
      $region16: #{tpu_custom_call.1} parent=5 // pred_fallthru
        _
      %p150 = scmp.le.s32.totalorder 1, %s17
      %p151 = scmp.lt.s32.totalorder %s17, 3
      %p152 = pnand %p150, %p151
      %p153 = pneg %p152
      // Predicated region
      $region25: #{tpu_custom_call.1} parent=5 // pred_check
        _
      $region26: #{tpu_custom_call.1} parent=5 // pred_check_branch
        %155 = sbr.rel (%p152) target = $region28
      $region27: #{tpu_custom_call.1} parent=5 // pred_region
        %s156 = ssub.s32 %s17, 1
        %s157 = sand.u32 %s30, 1
        %s158 = scalar_lea.sflag [#allocation3], %s157
        %s159 = sand.u32 %s30, 1
        %s160 = smul.addr %s159, 8
        %s161 = scalar_lea.vmem [#allocation2], %s160
        // Predicated region
        $region29: #{tpu_custom_call.1} parent=27 // pred_check
          %p162 = pneg %p43
        $region30: #{tpu_custom_call.1} parent=27 // pred_check_branch
          %164 = sbr.rel (%p162) target = $region32
        $region31: #{tpu_custom_call.1} parent=27 // pred_region
          %165 = dma.done %s158, 128
        $region32: #{tpu_custom_call.1} parent=27 // pred_fallthru
          _
        %s166 = sand.u32 %s56, 1
        %s167 = scalar_lea.sflag [#allocation6], %s166
        %s168 = sand.u32 %s56, 1
        %s169 = smul.addr %s168, 8
        %s170 = scalar_lea.vmem [#allocation5], %s169
        // Predicated region
        $region33: #{tpu_custom_call.1} parent=27 // pred_check
          %p171 = pneg %p69
        $region34: #{tpu_custom_call.1} parent=27 // pred_check_branch
          %173 = sbr.rel (%p171) target = $region36
        $region35: #{tpu_custom_call.1} parent=27 // pred_region
          %174 = dma.done %s167, 128
        $region36: #{tpu_custom_call.1} parent=27 // pred_fallthru
          _
        %s175 = sand.u32 %s30, 1
        %s176 = scalar_lea.sflag [#allocation3], %s175
        %s177 = sand.u32 %s30, 1
        %s178 = smul.addr %s177, 8
        %s179 = scalar_lea.vmem [#allocation2], %s178
        %p180 = pneg %p43
        %p181 = pneg %p40
        %s182 = sand.u32 %s56, 1
        %s183 = scalar_lea.sflag [#allocation6], %s182
        %s184 = sand.u32 %s56, 1
        %s185 = smul.addr %s184, 8
        %s186 = scalar_lea.vmem [#allocation5], %s185
        %p187 = pneg %p69
        %p188 = pneg %p66
        %p189 = pneg %p95
        %p190 = pneg %p92
        %s191 = sand.u32 %s82, 1
        %s192 = scalar_lea.sflag [#allocation4], %s191
        %s193 = sand.u32 %s82, 1
        %s194 = smul.addr %s193, 4
        %s195 = scalar_lea.vmem [#allocation7], %s194
        %v196 = vld [vmem:[%s161] sm:$0xff]
        %v197 = vld [vmem:[%s170] sm:$0xff]
        %v198 = vsub.f32 0.0, %v196
        %v199 = vmin.f32 %v196, %v198
        %v200 = vmul.f32 %v199, 1.442695
        %v201 = vpow.pop %v200
        %v202 = vadd.f32 %v201, 1.0
        %v203 = vlog2.pop %v202
        %v204 = vmul.f32 %v203, 0.6931472
        %v205 = vmax.f32 %v196, 0.0
        %v206 = vadd.f32 %v205, %v204
        %v207 = vmax.f32 %v198, 0.0
        %v208 = vadd.f32 %v207, %v204
        %v209 = vmax.f32 %v206, 1.0000005e-06
        %v210 = vmin.f32 %v209, 13.815511
        %v211 = vmax.f32 %v208, 1.0000005e-06
        %v212 = vmin.f32 %v211, 13.815511
        %vm213 = vcmp.eq.f32.partialorder %v197, 1.0
        %vm214 = vcmp.eq.f32.partialorder %v197, 0.0
        %v215 = vsel %vm213, %v210, %v212
        %v216 = vsub.f32 0.0, %v215
        %v217 = vmul.f32 %v216, 1.442695
        %v218 = vpow.pop %v217
        %v219 = vsel %vm213, %v212, %v210
        %v220 = vmul.f32 %v218, %v218
        %v221 = vmul.f32 %v220, %v219
        %v222 = vsel %vm213, %v221, 0.0
        %v223 = vrot.slane %v222, 4
        %v224 = vadd.f32 %v222, %v223
        %v225 = vrot.slane %v224, 2
        %v226 = vadd.f32 %v224, %v225
        %v227 = vrot.slane %v226, 1
        %v228 = vadd.f32 %v226, %v227
        %229 = vst [vmem:[%s195] sm:$0x1] %v228
        %v230 = vsel %vm214, %v221, 0.0
        %v231 = vrot.slane %v230, 4
        %v232 = vadd.f32 %v230, %v231
        %v233 = vrot.slane %v232, 2
        %v234 = vadd.f32 %v232, %v233
        %v235 = vrot.slane %v234, 1
        %v236 = vadd.f32 %v234, %v235
        %237 = vst [vmem:[%s195 + $0x1] sm:$0x1] %v236
        %v238 = vsel %vm213, 1.0, 0.0
        %v239 = vrot.slane %v238, 4
        %v240 = vadd.f32 %v238, %v239
        %v241 = vrot.slane %v240, 2
        %v242 = vadd.f32 %v240, %v241
        %v243 = vrot.slane %v242, 1
        %v244 = vadd.f32 %v242, %v243
        %245 = vst [vmem:[%s195 + $0x2] sm:$0x1] %v244
        %v246 = vsel %vm214, 1.0, 0.0
        %v247 = vrot.slane %v246, 4
        %v248 = vadd.f32 %v246, %v247
        %v249 = vrot.slane %v248, 2
        %v250 = vadd.f32 %v248, %v249
        %v251 = vrot.slane %v250, 1
        %v252 = vadd.f32 %v250, %v251
        %253 = vst [vmem:[%s195 + $0x3] sm:$0x1] %v252
        %s254 = sand.u32 %s82, 1
        %s255 = scalar_lea.sflag [#allocation4], %s254
        %s256 = sand.u32 %s82, 1
        %s257 = smul.addr %s256, 4
        %s258 = scalar_lea.vmem [#allocation7], %s257
        // Predicated region
        $region37: #{tpu_custom_call.1} parent=27 // pred_check
          %p259 = pneg %p92
        $region38: #{tpu_custom_call.1} parent=27 // pred_check_branch
          %261 = sbr.rel (%p259) target = $region40
        $region39: #{tpu_custom_call.1} parent=27 // pred_region
          %s263 = ssub.s32 64, 64
          %264 = vsyncadd %s255, %s263
          %s265 = smul.addr %s22, 64
          %s266 = scalar_lea.hbm %s2, %s265
          %s268 = sshll.u32 %s258, 4
          %s269 = int_to_ptr.vmem [resolvable:$true] %s268
          %271 = dma.vmem_to_hbm [thread:$0]  %s269, 64, %s266, %s255
        $region40: #{tpu_custom_call.1} parent=27 // pred_fallthru
          _
      $region28: #{tpu_custom_call.1} parent=5 // pred_fallthru
        _
      %p272 = scmp.le.s32.totalorder 2, %s17
      // Predicated region
      $region41: #{tpu_custom_call.1} parent=5 // pred_check
        %p273 = pneg %p272
      $region42: #{tpu_custom_call.1} parent=5 // pred_check_branch
        %275 = sbr.rel (%p273) target = $region44
      $region43: #{tpu_custom_call.1} parent=5 // pred_region
        %s276 = ssub.s32 %s17, 2
        // Predicated region
        $region45: #{tpu_custom_call.1} parent=43 // pred_check
          %p277 = pneg %p98
        $region46: #{tpu_custom_call.1} parent=43 // pred_check_branch
          %279 = sbr.rel (%p277) target = $region48
        $region47: #{tpu_custom_call.1} parent=43 // pred_region
          %s280 = sand.u32 %s83, 1
          %s281 = scalar_lea.sflag [#allocation4], %s280
          %s282 = sand.u32 %s83, 1
          %s283 = smul.addr %s282, 4
          %s284 = scalar_lea.vmem [#allocation7], %s283
          %285 = dma.done %s281, 64
        $region48: #{tpu_custom_call.1} parent=43 // pred_fallthru
          _
      $region44: #{tpu_custom_call.1} parent=5 // pred_fallthru
        _
    $region6: #{tpu_custom_call.1} parent=1 // loop_footer
      %s21 = sadd.s32 1, %s17
    $region7: #{tpu_custom_call.1} parent=1 // loop_footer_branch
      %16 = sbr.rel target = $region3
    $region8: #{tpu_custom_call.1} parent=1 // loop_exit
      _
    %286 = vsyncpa [#allocation3], 1
    %s287 = scalar_lea.sflag [#allocation3], 1
    %288 = vsyncpa %s287, 1
    %289 = vsyncpa [#allocation6], 1
    %s290 = scalar_lea.sflag [#allocation6], 1
    %291 = vsyncpa %s290, 1
    %292 = vsyncpa [#allocation4], 1
    %s293 = scalar_lea.sflag [#allocation4], 1
    %294 = vsyncpa %s293, 1

</llo_original>
